<compile_context>
chip_gen: v7x
topology: tpu7x:2x2x1
jax: 0.10.0
libtpu: 0.0.40
codegen_flags: <defaults>
</compile_context>

<pallas_src>
import functools
import math

import jax
import jax.numpy as jnp
from jax import lax
from jax.experimental import pallas as pl
from jax.experimental.pallas import tpu as pltpu


def _round_up(x: int, m: int) -> int:
    return ((x + m - 1) // m) * m


# --------------------------------------------------------------------------
# One-time parameter fusion (hoisted out of the per-call path).
# --------------------------------------------------------------------------
def fuse_lgm_params(w_mean, b_mean, w_std, b_std, dtype=None):
    """Pack both heads into one lane-dense [D_in, round_up(2*D_out,128)] block."""
    d_in, d_out = w_mean.shape
    if dtype is None:
        dtype = w_mean.dtype
    n_packed = _round_up(2 * d_out, 128)
    w = jnp.zeros((d_in, n_packed), dtype)
    w = w.at[:, :d_out].set(w_mean.astype(dtype))
    w = w.at[:, d_out:2 * d_out].set(w_std.astype(dtype))
    b = jnp.zeros((1, n_packed), dtype)
    b = b.at[0, :d_out].set(b_mean.astype(dtype))
    b = b.at[0, d_out:2 * d_out].set(b_std.astype(dtype))
    return w, b


# --------------------------------------------------------------------------
# Kernel body: one (batch-tile, K-tile) step.
# --------------------------------------------------------------------------
def lgm_kernel(x_ref, w_ref, b_ref, out_ref, acc_ref, *, d_out):
    k = pl.program_id(1)

    @pl.when(k == 0)
    def _():
        acc_ref[...] = jnp.zeros_like(acc_ref)

    acc_ref[...] += jnp.dot(x_ref[...], w_ref[...],
                            preferred_element_type=jnp.float32)

    @pl.when(k == pl.num_programs(1) - 1)
    def _():
        y = acc_ref[...] + b_ref[...].astype(jnp.float32)
        # cols [0:d_out) = mean (identity), cols [d_out:) = std (softplus).
        col = lax.broadcasted_iota(jnp.int32, y.shape, 1)
        # Numerically stable softplus (matches torch.nn.Softplus, beta=1).
        softplus = jnp.maximum(y, 0.0) + jnp.log1p(jnp.exp(-jnp.abs(y)))
        out_ref[...] = jnp.where(col >= d_out, softplus, y).astype(out_ref.dtype)


# --------------------------------------------------------------------------
# Wrapper.
# --------------------------------------------------------------------------
def lgm_forward(x, w_fused, b_fused, output_dim, *,
                tile_b=512, max_weight_vmem_bytes=None):
    """x: [..., D_in]; (w_fused, b_fused) from fuse_lgm_params.

    Returns (means, stds), each [..., output_dim] in x.dtype.
    """
    *lead, d_in = x.shape
    batch = math.prod(lead) if lead else 1
    x2 = x.reshape(batch, d_in)
    n_packed = w_fused.shape[1]
    out_dtype = x.dtype
    xbytes = jnp.dtype(x.dtype).itemsize
    wbytes = jnp.dtype(w_fused.dtype).itemsize
    obytes = jnp.dtype(out_dtype).itemsize

    # ---- chip-aware VMEM ceiling (v7x: 64 MiB, v5e/v6e: 128 MiB) ----------
    try:
        phys_vmem = int(pltpu.get_tpu_info().vmem_capacity_bytes)
    except Exception:
        phys_vmem = 64 << 20
    vmem_cap = max(16 << 20, min(int(phys_vmem * 0.75), phys_vmem - (8 << 20)))

    # ---- K (D_in) tiling fallback for layers too big to keep resident -----
    if max_weight_vmem_bytes is None:
        max_weight_vmem_bytes = vmem_cap // 2
    weight_bytes = d_in * n_packed * wbytes
    num_k = max(1, -(-weight_bytes // max_weight_vmem_bytes))
    if num_k > 1:
        tk = _round_up(-(-d_in // num_k), 128)   # x-tile last dim: 128-multiple
        num_k = -(-d_in // tk)
    if num_k <= 1:
        num_k, tk, k_pad = 1, d_in, d_in
    else:
        k_pad = tk * num_k

    x_k, w_k = x2, w_fused
    if k_pad != d_in:
        # Only on the large-layer fallback path: zero-pad K so every K block
        # is fully valid (ragged K would pollute the accumulation).
        x_k = jnp.pad(x2, ((0, 0), (0, k_pad - d_in)))
        w_k = jnp.pad(w_fused, ((0, k_pad - d_in), (0, 0)))

    # ---- batch tiling: no wrapper padding, ragged last block handled ------
    if batch <= 8:
        tb = batch
    else:
        tb = max(8, min(tile_b, (batch // 8) * 8))
        if pl.cdiv(batch, tb) < 2:
            # >= 2 parallel batch steps so v7x's two TensorCores both work.
            tb = max(8, _round_up(pl.cdiv(batch, 2), 8))

    # Conservative budget: double-buffered tiles + resident W/bias + the
    # in-kernel f32 accumulator/softplus intermediates.
    def _vmem_needed(tb_):
        return (2 * tb_ * tk * xbytes            # x tiles (double buffered)
                + 2 * tk * n_packed * wbytes     # fused weights
                + 8 * n_packed * wbytes          # bias (sublane padded)
                + 2 * tb_ * n_packed * obytes    # output tiles (double buffered)
                + 4 * tb_ * n_packed * 4)        # acc scratch + f32 temps

    while tb > 8 and _vmem_needed(tb) > vmem_cap:
        tb = max(8, _round_up(tb // 2, 8))
    num_b = pl.cdiv(batch, tb)

    vmem_limit = int(min(vmem_cap, int(_vmem_needed(tb) * 1.3) + (4 << 20)))

    cost = pl.CostEstimate(
        flops=2 * num_b * tb * k_pad * n_packed,
        transcendentals=2 * num_b * tb * n_packed,      # exp + log1p
        bytes_accessed=(batch * d_in * xbytes
                        + k_pad * n_packed * wbytes * (1 if num_k == 1 else num_b)
                        + n_packed * wbytes
                        + batch * n_packed * obytes),
    )

    def _run(single_buffer_resident):
        # Resident (constant index_map) blocks do not need a second buffer.
        w_kw = ({"pipeline_mode": pl.Buffered(1)}
                if (single_buffer_resident and num_k == 1) else {})
        b_kw = ({"pipeline_mode": pl.Buffered(1)}
                if single_buffer_resident else {})
        return pl.pallas_call(
            functools.partial(lgm_kernel, d_out=output_dim),
            out_shape=jax.ShapeDtypeStruct((batch, n_packed), out_dtype),
            grid_spec=pltpu.PrefetchScalarGridSpec(
                num_scalar_prefetch=0,
                grid=(num_b, num_k),
                in_specs=[
                    pl.BlockSpec((tb, tk), lambda i, k: (i, k)),              # x tile
                    pl.BlockSpec((tk, n_packed), lambda i, k: (k, 0), **w_kw),  # W
                    pl.BlockSpec((1, n_packed), lambda i, k: (0, 0), **b_kw),   # bias
                ],
                out_specs=pl.BlockSpec((tb, n_packed), lambda i, k: (i, 0)),
                scratch_shapes=[pltpu.VMEM((tb, n_packed), jnp.float32)],
            ),
            compiler_params=pltpu.CompilerParams(
                dimension_semantics=("parallel", "arbitrary"),
                vmem_limit_bytes=vmem_limit,
            ),
            cost_estimate=cost,
        )(x_k, w_k, b_fused)

    try:
        packed = jax.block_until_ready(_run(True))
    except Exception:
        # Fallback if single-buffered pipeline_mode is unsupported.
        packed = jax.block_until_ready(_run(False))

    means = packed[:, :output_dim].reshape(*lead, output_dim)
    stds = packed[:, output_dim:2 * output_dim].reshape(*lead, output_dim)
    return means, stds


# --------------------------------------------------------------------------
# Pure-JAX distribution helpers / init.
# --------------------------------------------------------------------------
def independent_normal_log_prob(means, stds, value):
    """Equivalent of D.Independent(D.Normal(means, stds), 1).log_prob(value)."""
    var = stds * stds
    lp = -((value - means) ** 2) / (2.0 * var) - jnp.log(stds) \
         - 0.5 * math.log(2.0 * math.pi)
    return jnp.sum(lp, axis=-1)


def init_lgm_params(key, input_dim, output_dim):
    """Deterministic init mimicking nn.Linear default (uniform +/- 1/sqrt(fan_in))."""
    k1, k2, k3, k4 = jax.random.split(key, 4)
    bound = 1.0 / math.sqrt(input_dim)
    w_mean = jax.random.uniform(k1, (input_dim, output_dim), jnp.float32, -bound, bound)
    b_mean = jax.random.uniform(k2, (output_dim,), jnp.float32, -bound, bound)
    w_std = jax.random.uniform(k3, (input_dim, output_dim), jnp.float32, -bound, bound)
    b_std = jax.random.uniform(k4, (output_dim,), jnp.float32, -bound, bound)
    return w_mean, b_mean, w_std, b_std


def _reference(x, w_mean, b_mean, w_std, b_std):
    means = x @ w_mean + b_mean
    z = x @ w_std + b_std
    stds = jnp.maximum(z, 0.0) + jnp.log1p(jnp.exp(-jnp.abs(z)))
    return means, stds


if __name__ == "__main__":
    key = jax.random.PRNGKey(0)
    kx, kp, kx2, kp3, kx3, kv = jax.random.split(key, 6)

    # ---- Test 1: main path (resident fused weights, no wrapper padding) ----
    B, D_in, D_out = 16, 32, 16
    x = jax.random.normal(kx, (B, D_in), jnp.float32)
    w_mean, b_mean, w_std, b_std = init_lgm_params(kp, D_in, D_out)
    w_fused, b_fused = fuse_lgm_params(w_mean, b_mean, w_std, b_std)  # once, not per call

    means, stds = lgm_forward(x, w_fused, b_fused, D_out)
    jax.block_until_ready((means, stds))

    ref_m, ref_s = _reference(x, w_mean, b_mean, w_std, b_std)
    assert means.shape == (B, D_out) and stds.shape == (B, D_out)
    assert means.dtype == x.dtype and stds.dtype == x.dtype
    assert jnp.allclose(means, ref_m, atol=1e-5, rtol=1e-5)
    assert jnp.allclose(stds, ref_s, atol=1e-5, rtol=1e-5)
    assert bool(jnp.all(stds > 0.0))

    # ---- Test 2: ragged batch (Pallas masks the last partial block) --------
    xr = jax.random.normal(kx2, (20, D_in), jnp.float32)
    mr, sr = lgm_forward(xr, w_fused, b_fused, D_out)
    jax.block_until_ready((mr, sr))
    rm, rs = _reference(xr, w_mean, b_mean, w_std, b_std)
    assert jnp.allclose(mr, rm, atol=1e-5, rtol=1e-5)
    assert jnp.allclose(sr, rs, atol=1e-5, rtol=1e-5)

    # ---- Test 3: force the K-tiled (non-resident weight) fallback path -----
    D_in3 = 256
    p3 = init_lgm_params(kp3, D_in3, D_out)
    wf3, bf3 = fuse_lgm_params(*p3)
    x3 = jax.random.normal(kx3, (B, D_in3), jnp.float32)
    m3, s3 = lgm_forward(x3, wf3, bf3, D_out, max_weight_vmem_bytes=64 * 1024)
    jax.block_until_ready((m3, s3))
    r3m, r3s = _reference(x3, *p3)
    assert jnp.allclose(m3, r3m, atol=1e-4, rtol=1e-4)
    assert jnp.allclose(s3, r3s, atol=1e-4, rtol=1e-4)

    # ---- Distribution semantics (Independent(Normal, 1)) in plain JAX ------
    value = jax.random.normal(kv, (B, D_out), jnp.float32)
    lp = independent_normal_log_prob(means, stds, value)
    assert lp.shape == (B,)

    # TODO(synk): torch.distributions.Distribution object construction has no
    # Pallas equivalent; the kernel returns (means, stds) parameterizing it.
    print("KERNEL_OK")
</pallas_src>

<mosaic_0001>
module attributes {stable_mosaic.version = 11 : i64} {
  func.func @lgm_kernel(%arg0: i32, %arg1: i32, %arg2: memref<8x32xf32, #tpu.memory_space<vmem>>, %arg3: memref<32x128xf32, #tpu.memory_space<vmem>>, %arg4: memref<1x128xf32, #tpu.memory_space<vmem>>, %arg5: memref<8x128xf32, #tpu.memory_space<vmem>>, %arg6: memref<8x128xf32, #tpu.memory_space<vmem>>) attributes {dimension_semantics = [#tpu.dimension_semantics<parallel>, #tpu.dimension_semantics<arbitrary>], iteration_bounds = array<i64: 2, 1>, scalar_prefetch = 0 : i64, scratch_operands = 1 : i64, tpu.core_type = #tpu.core_type<tc>, window_params = [{transform_indices = @transform_0, window_bounds = array<i64: 8, 32>}, {pipeline_mode = #tpu.pipeline_mode<synchronous>, transform_indices = @transform_1, window_bounds = array<i64: 32, 128>}, {pipeline_mode = #tpu.pipeline_mode<synchronous>, transform_indices = @transform_2, window_bounds = array<i64: 1, 128>}, {transform_indices = @transform_3, window_bounds = array<i64: 8, 128>}]} {
    %c0_i32 = arith.constant 0 : i32
    %0 = arith.cmpi eq, %arg1, %c0_i32 : i32
    %1 = arith.extui %0 : i1 to i32
    %c0_i32_0 = arith.constant 0 : i32
    %2 = arith.cmpi ne, %1, %c0_i32_0 : i32
    scf.if %2 {
      %cst_10 = arith.constant 0.000000e+00 : f32
      %12 = vector.broadcast %cst_10 : f32 to vector<8x128xf32>
      %c0_11 = arith.constant 0 : index
      %c0_12 = arith.constant 0 : index
      %13 = vector.load %arg6[%c0_11, %c0_12] : memref<8x128xf32, #tpu.memory_space<vmem>>, vector<8x128xf32>
      tpu.vector_store %arg6[%c0_11, %c0_12], %12 {strides = array<i32>} : memref<8x128xf32, #tpu.memory_space<vmem>>, vector<8x128xf32>,
    } else {
    }
    %c0 = arith.constant 0 : index
    %c0_1 = arith.constant 0 : index
    %3 = vector.load %arg6[%c0, %c0_1] : memref<8x128xf32, #tpu.memory_space<vmem>>, vector<8x128xf32>
    %c0_2 = arith.constant 0 : index
    %c0_3 = arith.constant 0 : index
    %4 = vector.load %arg2[%c0_2, %c0_3] : memref<8x32xf32, #tpu.memory_space<vmem>>, vector<8x32xf32>
    %c0_4 = arith.constant 0 : index
    %c0_5 = arith.constant 0 : index
    %5 = vector.load %arg3[%c0_4, %c0_5] : memref<32x128xf32, #tpu.memory_space<vmem>>, vector<32x128xf32>
    %cst = arith.constant dense<0.000000e+00> : vector<8x128xf32>
    %6 = tpu.matmul %4, %5, %cst {dimension_numbers = #tpu.dot_dimension_numbers<[1], [0], [0], [1], [0, 0, 1, 1], [], []>} : vector<8x32xf32>, vector<32x128xf32>, vector<8x128xf32> -> vector<8x128xf32>
    %7 = arith.addf %3, %6 : vector<8x128xf32>
    %c0_6 = arith.constant 0 : index
    %c0_7 = arith.constant 0 : index
    %8 = vector.load %arg6[%c0_6, %c0_7] : memref<8x128xf32, #tpu.memory_space<vmem>>, vector<8x128xf32>
    tpu.vector_store %arg6[%c0_6, %c0_7], %7 {strides = array<i32>} : memref<8x128xf32, #tpu.memory_space<vmem>>, vector<8x128xf32>,
    %c0_i32_8 = arith.constant 0 : i32
    %9 = arith.cmpi eq, %arg1, %c0_i32_8 : i32
    %10 = arith.extui %9 : i1 to i32
    %c0_i32_9 = arith.constant 0 : i32
    %11 = arith.cmpi ne, %10, %c0_i32_9 : i32
    scf.if %11 {
      %c0_10 = arith.constant 0 : index
      %c0_11 = arith.constant 0 : index
      %12 = vector.load %arg6[%c0_10, %c0_11] : memref<8x128xf32, #tpu.memory_space<vmem>>, vector<8x128xf32>
      %c0_12 = arith.constant 0 : index
      %c0_13 = arith.constant 0 : index
      %13 = vector.load %arg4[%c0_12, %c0_13] : memref<1x128xf32, #tpu.memory_space<vmem>>, vector<1x128xf32>
      %14 = vector.broadcast %13 : vector<1x128xf32> to vector<8x128xf32>
      %15 = arith.addf %12, %14 : vector<8x128xf32>
      %16 = tpu.iota {dimensions = array<i32: 1>} : vector<8x128xi32>
      %cst_14 = arith.constant 0.000000e+00 : f32
      %17 = vector.broadcast %cst_14 : f32 to vector<8x128xf32>
      %18 = arith.maximumf %15, %17 : vector<8x128xf32>
      %19 = math.absf %15 : vector<8x128xf32>
      %cst_15 = arith.constant 0.000000e+00 : f32
      %20 = vector.broadcast %cst_15 : f32 to vector<8x128xf32>
      %21 = arith.subf %20, %19 : vector<8x128xf32>
      %22 = math.exp %21 : vector<8x128xf32>
      %23 = math.log1p %22 : vector<8x128xf32>
      %24 = arith.addf %18, %23 : vector<8x128xf32>
      %c16_i32 = arith.constant 16 : i32
      %25 = vector.broadcast %c16_i32 : i32 to vector<8x128xi32>
      %26 = arith.cmpi sge, %16, %25 : vector<8x128xi32>
      %27 = arith.select %26, %24, %15 : vector<8x128xi1>, vector<8x128xf32>
      %c0_16 = arith.constant 0 : index
      %c0_17 = arith.constant 0 : index
      %28 = vector.load %arg5[%c0_16, %c0_17] : memref<8x128xf32, #tpu.memory_space<vmem>>, vector<8x128xf32>
      tpu.vector_store %arg5[%c0_16, %c0_17], %27 {strides = array<i32>} : memref<8x128xf32, #tpu.memory_space<vmem>>, vector<8x128xf32>,
    } else {
    }
    return
  }
  func.func @transform_0(%arg0: i32, %arg1: i32) -> (i32, i32) {
    %c0_i32 = arith.constant 0 : i32
    return %arg0, %arg1 : i32, i32
  }
  func.func @transform_1(%arg0: i32, %arg1: i32) -> (i32, i32) {
    %c0_i32 = arith.constant 0 : i32
    %c0_i32_0 = arith.constant 0 : i32
    return %arg1, %c0_i32 : i32, i32
  }
  func.func @transform_2(%arg0: i32, %arg1: i32) -> (i32, i32) {
    %c0_i32 = arith.constant 0 : i32
    %c0_i32_0 = arith.constant 0 : i32
    %c0_i32_1 = arith.constant 0 : i32
    return %c0_i32, %c0_i32_0 : i32, i32
  }
  func.func @transform_3(%arg0: i32, %arg1: i32) -> (i32, i32) {
    %c0_i32 = arith.constant 0 : i32
    %c0_i32_0 = arith.constant 0 : i32
    return %arg0, %c0_i32 : i32, i32
  }
}

module attributes {stable_mosaic.version = 11 : i64} {
  func.func @lgm_kernel(%arg0: i32, %arg1: i32, %arg2: memref<8x32xf32, #tpu.memory_space<vmem>>, %arg3: memref<32x128xf32, #tpu.memory_space<vmem>>, %arg4: memref<1x128xf32, #tpu.memory_space<vmem>>, %arg5: memref<8x128xf32, #tpu.memory_space<vmem>>, %arg6: memref<8x128xf32, #tpu.memory_space<vmem>>) attributes {dimension_semantics = [#tpu.dimension_semantics<parallel>, #tpu.dimension_semantics<arbitrary>], iteration_bounds = array<i64: 2, 1>, scalar_prefetch = 0 : i64, scratch_operands = 1 : i64, tpu.core_type = #tpu.core_type<tc>, window_params = [{transform_indices = @transform_0, window_bounds = array<i64: 8, 32>}, {transform_indices = @transform_1, window_bounds = array<i64: 32, 128>}, {pipeline_mode = #tpu.pipeline_mode<synchronous>, transform_indices = @transform_2, window_bounds = array<i64: 1, 128>}, {transform_indices = @transform_3, window_bounds = array<i64: 8, 128>}]} {
    %c0_i32 = arith.constant 0 : i32
    %0 = arith.cmpi eq, %arg1, %c0_i32 : i32
    %1 = arith.extui %0 : i1 to i32
    %c0_i32_0 = arith.constant 0 : i32
    %2 = arith.cmpi ne, %1, %c0_i32_0 : i32
    scf.if %2 {
      %cst_10 = arith.constant 0.000000e+00 : f32
      %12 = vector.broadcast %cst_10 : f32 to vector<8x128xf32>
      %c0_11 = arith.constant 0 : index
      %c0_12 = arith.constant 0 : index
      %13 = vector.load %arg6[%c0_11, %c0_12] : memref<8x128xf32, #tpu.memory_space<vmem>>, vector<8x128xf32>
      tpu.vector_store %arg6[%c0_11, %c0_12], %12 {strides = array<i32>} : memref<8x128xf32, #tpu.memory_space<vmem>>, vector<8x128xf32>,
    } else {
    }
    %c0 = arith.constant 0 : index
    %c0_1 = arith.constant 0 : index
    %3 = vector.load %arg6[%c0, %c0_1] : memref<8x128xf32, #tpu.memory_space<vmem>>, vector<8x128xf32>
    %c0_2 = arith.constant 0 : index
    %c0_3 = arith.constant 0 : index
    %4 = vector.load %arg2[%c0_2, %c0_3] : memref<8x32xf32, #tpu.memory_space<vmem>>, vector<8x32xf32>
    %c0_4 = arith.constant 0 : index
    %c0_5 = arith.constant 0 : index
    %5 = vector.load %arg3[%c0_4, %c0_5] : memref<32x128xf32, #tpu.memory_space<vmem>>, vector<32x128xf32>
    %cst = arith.constant dense<0.000000e+00> : vector<8x128xf32>
    %6 = tpu.matmul %4, %5, %cst {dimension_numbers = #tpu.dot_dimension_numbers<[1], [0], [0], [1], [0, 0, 1, 1], [], []>} : vector<8x32xf32>, vector<32x128xf32>, vector<8x128xf32> -> vector<8x128xf32>
    %7 = arith.addf %3, %6 : vector<8x128xf32>
    %c0_6 = arith.constant 0 : index
    %c0_7 = arith.constant 0 : index
    %8 = vector.load %arg6[%c0_6, %c0_7] : memref<8x128xf32, #tpu.memory_space<vmem>>, vector<8x128xf32>
    tpu.vector_store %arg6[%c0_6, %c0_7], %7 {strides = array<i32>} : memref<8x128xf32, #tpu.memory_space<vmem>>, vector<8x128xf32>,
    %c0_i32_8 = arith.constant 0 : i32
    %9 = arith.cmpi eq, %arg1, %c0_i32_8 : i32
    %10 = arith.extui %9 : i1 to i32
    %c0_i32_9 = arith.constant 0 : i32
    %11 = arith.cmpi ne, %10, %c0_i32_9 : i32
    scf.if %11 {
      %c0_10 = arith.constant 0 : index
      %c0_11 = arith.constant 0 : index
      %12 = vector.load %arg6[%c0_10, %c0_11] : memref<8x128xf32, #tpu.memory_space<vmem>>, vector<8x128xf32>
      %c0_12 = arith.constant 0 : index
      %c0_13 = arith.constant 0 : index
      %13 = vector.load %arg4[%c0_12, %c0_13] : memref<1x128xf32, #tpu.memory_space<vmem>>, vector<1x128xf32>
      %14 = vector.broadcast %13 : vector<1x128xf32> to vector<8x128xf32>
      %15 = arith.addf %12, %14 : vector<8x128xf32>
      %16 = tpu.iota {dimensions = array<i32: 1>} : vector<8x128xi32>
      %cst_14 = arith.constant 0.000000e+00 : f32
      %17 = vector.broadcast %cst_14 : f32 to vector<8x128xf32>
      %18 = arith.maximumf %15, %17 : vector<8x128xf32>
      %19 = math.absf %15 : vector<8x128xf32>
      %cst_15 = arith.constant 0.000000e+00 : f32
      %20 = vector.broadcast %cst_15 : f32 to vector<8x128xf32>
      %21 = arith.subf %20, %19 : vector<8x128xf32>
      %22 = math.exp %21 : vector<8x128xf32>
      %23 = math.log1p %22 : vector<8x128xf32>
      %24 = arith.addf %18, %23 : vector<8x128xf32>
      %c16_i32 = arith.constant 16 : i32
      %25 = vector.broadcast %c16_i32 : i32 to vector<8x128xi32>
      %26 = arith.cmpi sge, %16, %25 : vector<8x128xi32>
      %27 = arith.select %26, %24, %15 : vector<8x128xi1>, vector<8x128xf32>
      %c0_16 = arith.constant 0 : index
      %c0_17 = arith.constant 0 : index
      %28 = vector.load %arg5[%c0_16, %c0_17] : memref<8x128xf32, #tpu.memory_space<vmem>>, vector<8x128xf32>
      tpu.vector_store %arg5[%c0_16, %c0_17], %27 {strides = array<i32>} : memref<8x128xf32, #tpu.memory_space<vmem>>, vector<8x128xf32>,
    } else {
    }
    return
  }
  func.func @transform_0(%arg0: i32, %arg1: i32) -> (i32, i32) {
    %c0_i32 = arith.constant 0 : i32
    return %arg0, %arg1 : i32, i32
  }
  func.func @transform_1(%arg0: i32, %arg1: i32) -> (i32, i32) {
    %c0_i32 = arith.constant 0 : i32
    %c0_i32_0 = arith.constant 0 : i32
    return %arg1, %c0_i32 : i32, i32
  }
  func.func @transform_2(%arg0: i32, %arg1: i32) -> (i32, i32) {
    %c0_i32 = arith.constant 0 : i32
    %c0_i32_0 = arith.constant 0 : i32
    %c0_i32_1 = arith.constant 0 : i32
    return %c0_i32, %c0_i32_0 : i32, i32
  }
  func.func @transform_3(%arg0: i32, %arg1: i32) -> (i32, i32) {
    %c0_i32 = arith.constant 0 : i32
    %c0_i32_0 = arith.constant 0 : i32
    return %arg0, %c0_i32 : i32, i32
  }
}

</mosaic_0001>

<llo_original>
// kernel: tpu_custom_call.1
$region0: #{tpu_custom_call.1}
  #allocation0 [shape = 'u32[]', space=smem, size = 0x4, offset = 0x4, fixed_abs, tag = 'smem constant byte address 0x4 - core index']
  #allocation1 [shape = 'u32[144,128]{1,0:T(1,128)}', space=vmem, size = 0x12000, scoped, tag = 'internal scratch']
  #allocation2 [shape = 'f32[8,128]{1,0:T(8,128)}', space=vmem, size = 0x1000, scoped, tag = 'scratch operand']
  %s0 = inlined_call_operand.hbm [shape: f32[16,32], index: 0, kind: input, shape index: {}]
  %s1 = inlined_call_operand.hbm [shape: f32[32,128], index: 1, kind: input, shape index: {}]
  %s2 = inlined_call_operand.vmem [shape: f32[1,128], index: 2, kind: input, shape index: {}]
  %s3 = inlined_call_operand.hbm [shape: f32[16,128], index: 3, kind: output, shape index: {}]
  %s4 = sld [smem:[#allocation0]]
  $region61: #{tpu_custom_call.1} parent=0
    _
  %s6 = ssub.s32 1, %s4
  %s7 = scalar_select 0, %s6, %s4
  $region1: #{tpu_custom_call.1} parent=0
    #allocation3 [shape = 'u8[8192]{0}', space=vmem, size = 0x2000, scoped, tag = 'input window, operand 0']
    #allocation4 [shape = 's32[2]{0}', space=sflag, size = 0x8, scoped, tag = 'scoped memory for tpu_custom_call.1']
    #allocation5 [shape = 's32[2]{0}', space=sflag, size = 0x8, scoped, tag = 'scoped memory for tpu_custom_call.1']
    #allocation6 [shape = 'u8[16384]{0}', space=vmem, size = 0x4000, scoped, tag = 'input window, operand 1, single buffered']
    #allocation7 [shape = 's32[1]{0}', space=sflag, size = 0x4, scoped, tag = 'scoped memory for tpu_custom_call.1']
    #allocation8 [shape = 'u8[8192]{0}', space=vmem, size = 0x2000, scoped, tag = 'output window, operand 0']
    %8 = vsyncpa [#allocation4], 0
    %s9 = scalar_lea.sflag [#allocation4], 1
    %10 = vsyncpa %s9, 0
    %11 = vsyncpa [#allocation7], 0
    %12 = vsyncpa [#allocation5], 0
    %s13 = scalar_lea.sflag [#allocation5], 1
    %14 = vsyncpa %s13, 0
    loop: start=0, step=1, limit=4
    $region2: #{tpu_custom_call.1} parent=1 // loop_pre_header
      _
    $region3: #{tpu_custom_call.1} parent=1 // loop_header
      %s16 = sphi 0, %s20
      %p17 = scmp.ge.s32.totalorder %s16, 4
      %s23 = sphi 0, %s35
      %s24 = sphi 0, %s31
      %s25 = sphi 0, %s23
      %s26 = sphi 0, %s24
      %s27 = sphi 0, %s25
      %s28 = sphi 0, %s26
      %s40 = sphi 0, %s42
      %s43 = sphi 0, %s40
      %s44 = sphi 0, %s43
      %s60 = sphi 0, %s44
      %s66 = sphi 0, %s68
      %s69 = sphi 0, %s66
      %s70 = sphi 0, %s69
      %s86 = sphi 0, %s70
      %s90 = sphi 0, %s90
      %s92 = sphi 0, %s90
      %s93 = sphi 0, %s92
      %s107 = sphi 0, %s93
      %s113 = sphi 0, %s115
      %s116 = sphi 0, %s113
      %s117 = sphi 0, %s116
      %s133 = sphi 0, %s117
    $region4: #{tpu_custom_call.1} parent=1 // loop_header_branch
      %19 = sbr.rel (%p17) target = $region8
    $region5: #{tpu_custom_call.1} parent=1 // loop_body
      %s21 = ssub.s32 %s16, 1
      %s22 = ssub.s32 %s16, 2
      %s29 = sadd.s32 1, %s24
      %p30 = scmp.ge.s32.totalorder %s29, 1
      %s31 = scalar_select %p30, 0, %s29
      %s32 = sadd.s32 1, %s23
      %s33 = scalar_select %p30, %s32, %s23
      %p34 = scmp.ge.s32.totalorder %s33, 2
      %s35 = scalar_select %p34, 0, %s33
      %s36 = ssub.s32 %s23, %s35
      %s37 = ssub.s32 %s24, %s31
      %s38 = sor.u32 %s36, %s37
      %p39 = scmp.eq.s32.totalorder %s38, 0
      %s41 = sadd.s32 %s40, 1
      %s42 = scalar_select %p39, %s40, %s41
      %p45 = pneg %p39
      %p46 = scmp.eq.s32.totalorder %s16, 1
      %p47 = por %p45, %p46
      %p48 = scmp.ne.s32.totalorder %s40, %s43
      %p49 = scmp.eq.s32.totalorder %s16, 0
      %p50 = por %p48, %p49
      %p51 = scmp.ne.s32.totalorder %s40, %s43
      %p52 = scmp.eq.s32.totalorder %s21, 1
      %p53 = por %p51, %p52
      %p54 = scmp.ne.s32.totalorder %s43, %s44
      %p55 = scmp.eq.s32.totalorder %s21, 0
      %p56 = por %p54, %p55
      %p57 = scmp.ne.s32.totalorder %s43, %s44
      %p58 = scmp.eq.s32.totalorder %s22, 1
      %p59 = por %p57, %p58
      %p61 = scmp.ne.s32.totalorder %s44, %s60
      %p62 = scmp.eq.s32.totalorder %s22, 0
      %p63 = por %p61, %p62
      %s64 = ssub.s32 %s24, %s31
      %p65 = scmp.eq.s32.totalorder %s64, 0
      %s67 = sadd.s32 %s66, 1
      %s68 = scalar_select %p65, %s66, %s67
      %p71 = pneg %p65
      %p72 = scmp.eq.s32.totalorder %s16, 1
      %p73 = por %p71, %p72
      %p74 = scmp.ne.s32.totalorder %s66, %s69
      %p75 = scmp.eq.s32.totalorder %s16, 0
      %p76 = por %p74, %p75
      %p77 = scmp.ne.s32.totalorder %s66, %s69
      %p78 = scmp.eq.s32.totalorder %s21, 1
      %p79 = por %p77, %p78
      %p80 = scmp.ne.s32.totalorder %s69, %s70
      %p81 = scmp.eq.s32.totalorder %s21, 0
      %p82 = por %p80, %p81
      %p83 = scmp.ne.s32.totalorder %s69, %s70
      %p84 = scmp.eq.s32.totalorder %s22, 1
      %p85 = por %p83, %p84
      %p87 = scmp.ne.s32.totalorder %s70, %s86
      %p88 = scmp.eq.s32.totalorder %s22, 0
      %p89 = por %p87, %p88
      %s91 = sadd.s32 %s90, 1
      %p94 = scmp.eq.s32.totalorder %s16, 1
      %p95 = scmp.ne.s32.totalorder %s90, %s92
      %p96 = scmp.eq.s32.totalorder %s16, 0
      %p97 = por %p95, %p96
      %p98 = scmp.ne.s32.totalorder %s90, %s92
      %p99 = scmp.eq.s32.totalorder %s21, 1
      %p100 = por %p98, %p99
      %p101 = scmp.ne.s32.totalorder %s92, %s93
      %p102 = scmp.eq.s32.totalorder %s21, 0
      %p103 = por %p101, %p102
      %p104 = scmp.ne.s32.totalorder %s92, %s93
      %p105 = scmp.eq.s32.totalorder %s22, 1
      %p106 = por %p104, %p105
      %p108 = scmp.ne.s32.totalorder %s93, %s107
      %p109 = scmp.eq.s32.totalorder %s22, 0
      %p110 = por %p108, %p109
      %s111 = ssub.s32 %s23, %s35
      %p112 = scmp.eq.s32.totalorder %s111, 0
      %s114 = sadd.s32 %s113, 1
      %s115 = scalar_select %p112, %s113, %s114
      %p118 = pneg %p112
      %p119 = scmp.eq.s32.totalorder %s16, 1
      %p120 = por %p118, %p119
      %p121 = scmp.ne.s32.totalorder %s113, %s116
      %p122 = scmp.eq.s32.totalorder %s16, 0
      %p123 = por %p121, %p122
      %p124 = scmp.ne.s32.totalorder %s113, %s116
      %p125 = scmp.eq.s32.totalorder %s21, 1
      %p126 = por %p124, %p125
      %p127 = scmp.ne.s32.totalorder %s116, %s117
      %p128 = scmp.eq.s32.totalorder %s21, 0
      %p129 = por %p127, %p128
      %p130 = scmp.ne.s32.totalorder %s116, %s117
      %p131 = scmp.eq.s32.totalorder %s22, 1
      %p132 = por %p130, %p131
      %p134 = scmp.ne.s32.totalorder %s117, %s133
      %p135 = scmp.eq.s32.totalorder %s22, 0
      %p136 = por %p134, %p135
      %p137 = scmp.le.s32.totalorder 1, %s16
      %p138 = scmp.lt.s32.totalorder %s16, 3
      %p139 = pnand %p137, %p138
      %p140 = pneg %p139
      // Predicated region
      $region9: #{tpu_custom_call.1} parent=5 // pred_check
        _
      $region10: #{tpu_custom_call.1} parent=5 // pred_check_branch
        %142 = sbr.rel (%p139) target = $region12
      $region11: #{tpu_custom_call.1} parent=5 // pred_region
        %s143 = ssub.s32 %s16, 1
        // Predicated region
        $region13: #{tpu_custom_call.1} parent=11 // pred_check
          %p144 = pneg %p82
        $region14: #{tpu_custom_call.1} parent=11 // pred_check_branch
          %146 = sbr.rel (%p144) target = $region16
        $region15: #{tpu_custom_call.1} parent=11 // pred_region
          %s147 = smul.u32 4, %s26
          %s149 = ssub.s32 512, 512
          %150 = vsyncadd [#allocation7], %s149
          %s151 = smul.addr %s147, 128
          %s152 = scalar_lea.hbm %s1, %s151
          %s153 = sshll.u32 [#allocation6], 4
          %s154 = int_to_ptr.vmem [resolvable:$true] %s153
          %159 = dma.hbm_to_vmem [thread:$0]  %s152, 512, %s154, [#allocation7], 128, 128, 8
        $region16: #{tpu_custom_call.1} parent=11 // pred_fallthru
          _
        // Predicated region
        $region17: #{tpu_custom_call.1} parent=11 // pred_check
          %p160 = pneg %p103
        $region18: #{tpu_custom_call.1} parent=11 // pred_check_branch
          %162 = sbr.rel (%p160) target = $region20
        $region19: #{tpu_custom_call.1} parent=11 // pred_region
          _
        $region20: #{tpu_custom_call.1} parent=11 // pred_fallthru
          _
      $region12: #{tpu_custom_call.1} parent=5 // pred_fallthru
        _
      %p163 = scmp.lt.s32.totalorder %s16, 2
      // Predicated region
      $region21: #{tpu_custom_call.1} parent=5 // pred_check
        %p164 = pneg %p163
      $region22: #{tpu_custom_call.1} parent=5 // pred_check_branch
        %166 = sbr.rel (%p164) target = $region24
      $region23: #{tpu_custom_call.1} parent=5 // pred_region
        // Predicated region
        $region25: #{tpu_custom_call.1} parent=23 // pred_check
          %p167 = pneg %p50
        $region26: #{tpu_custom_call.1} parent=23 // pred_check_branch
          %169 = sbr.rel (%p167) target = $region28
        $region27: #{tpu_custom_call.1} parent=23 // pred_region
          %s170 = sand.u32 %s40, 1
          %s171 = scalar_lea.sflag [#allocation4], %s170
          %s172 = sand.u32 %s40, 1
          %s173 = smul.addr %s172, 8
          %s174 = scalar_lea.vmem [#allocation3], %s173
          %s176 = ssub.s32 128, 128
          %177 = vsyncadd %s171, %s176
          %s178 = sadd.s32 %s24, %s23
          %s179 = smul.addr %s178, 128
          %s180 = scalar_lea.hbm %s0, %s179
          %s182 = sshll.u32 %s174, 4
          %s183 = int_to_ptr.vmem [resolvable:$true] %s182
          %185 = dma.hbm_to_vmem [thread:$0]  %s180, 128, %s183, %s171
        $region28: #{tpu_custom_call.1} parent=23 // pred_fallthru
          _
      $region24: #{tpu_custom_call.1} parent=5 // pred_fallthru
        _
      %p186 = scmp.le.s32.totalorder 1, %s16
      %p187 = scmp.lt.s32.totalorder %s16, 3
      %p188 = pnand %p186, %p187
      %p189 = pneg %p188
      // Predicated region
      $region29: #{tpu_custom_call.1} parent=5 // pred_check
        _
      $region30: #{tpu_custom_call.1} parent=5 // pred_check_branch
        %191 = sbr.rel (%p188) target = $region32
      $region31: #{tpu_custom_call.1} parent=5 // pred_region
        %s192 = ssub.s32 %s16, 1
        %s193 = sand.u32 %s43, 1
        %s194 = scalar_lea.sflag [#allocation4], %s193
        %s195 = sand.u32 %s43, 1
        %s196 = smul.addr %s195, 8
        %s197 = scalar_lea.vmem [#allocation3], %s196
        // Predicated region
        $region33: #{tpu_custom_call.1} parent=31 // pred_check
          %p198 = pneg %p56
        $region34: #{tpu_custom_call.1} parent=31 // pred_check_branch
          %200 = sbr.rel (%p198) target = $region36
        $region35: #{tpu_custom_call.1} parent=31 // pred_region
          %201 = dma.done %s194, 128
        $region36: #{tpu_custom_call.1} parent=31 // pred_fallthru
          _
        // Predicated region
        $region37: #{tpu_custom_call.1} parent=31 // pred_check
          %p202 = pneg %p82
        $region38: #{tpu_custom_call.1} parent=31 // pred_check_branch
          %204 = sbr.rel (%p202) target = $region40
        $region39: #{tpu_custom_call.1} parent=31 // pred_region
          %205 = dma.done [#allocation7], 512
        $region40: #{tpu_custom_call.1} parent=31 // pred_fallthru
          _
        %s206 = sand.u32 %s43, 1
        %s207 = scalar_lea.sflag [#allocation4], %s206
        %s208 = sand.u32 %s43, 1
        %s209 = smul.addr %s208, 8
        %s210 = scalar_lea.vmem [#allocation3], %s209
        %p211 = pneg %p56
        %p212 = pneg %p53
        %p213 = pneg %p82
        %p214 = pneg %p79
        %p215 = pneg %p103
        %p216 = pneg %p100
        %p217 = pneg %p129
        %p218 = pneg %p126
        %s219 = sand.u32 %s116, 1
        %s220 = scalar_lea.sflag [#allocation5], %s219
        %s221 = sand.u32 %s116, 1
        %s222 = smul.addr %s221, 8
        %s223 = scalar_lea.vmem [#allocation8], %s222
        %s224 = smul.u32 4, %s26
        %p225 = scmp.eq.s32.totalorder %s26, 0
        // Predicated region
        $region41: #{tpu_custom_call.1} parent=31 // pred_check
          %p226 = pneg %p225
        $region42: #{tpu_custom_call.1} parent=31 // pred_check_branch
          %228 = sbr.rel (%p226) target = $region44
        $region43: #{tpu_custom_call.1} parent=31 // pred_region
          %229 = vst [vmem:[#allocation2] sm:$0xff] 0.0
        $region44: #{tpu_custom_call.1} parent=31 // pred_fallthru
          _
        %v230 = vld [vmem:[#allocation2] sm:$0xff]
        %v231 = vld [vmem:[%s197] sm:$0xff]
        %v232 = vld [vmem:[#allocation6] sm:$0xff]
        %v233 = vld [vmem:[#allocation6 + $0x8] sm:$0xff]
        %v234 = vld [vmem:[#allocation6 + $0x10] sm:$0xff]
        %v235 = vld [vmem:[#allocation6 + $0x18] sm:$0xff]
        %vm236 = vcmask 261120
        %v238 = vsel %vm236, %v231, 0
        %240 = vmatprep.subr.mxu0 0.0
        %241 = vmatpush1.msra.mxu0 %v232
        %242 = vmatprep.subr.mxu0 0.0
        %243 = vmatpush1.msra.mxu0 %v233
        %244 = vmatprep.subr.mxu0 0.0
        %245 = vmatpush1.msra.mxu0 %v234
        %246 = vmatprep.subr.mxu0 0.0
        %247 = vmatpush1.msra.mxu0 %v235
        %248 = vmatprep.subr.mxu0 0.0
        %249 = vmatpush1.msra.mxu0 0.0
        %250 = vmatprep.subr.mxu0 0.0
        %251 = vmatpush1.msra.mxu0 0.0
        %252 = vmatprep.subr.mxu0 0.0
        %253 = vmatpush1.msra.mxu0 0.0
        %254 = vmatprep.subr.mxu0 0.0
        %255 = vmatpush1.msra.mxu0 0.0
        %256 = vmatprep.subr.mxu0 0.0
        %257 = vmatpush1.msra.mxu0 0.0
        %258 = vmatprep.subr.mxu0 0.0
        %259 = vmatpush1.msra.mxu0 0.0
        %260 = vmatprep.subr.mxu0 0.0
        %261 = vmatpush1.msra.mxu0 0.0
        %262 = vmatprep.subr.mxu0 0.0
        %263 = vmatpush1.msra.mxu0 0.0
        %264 = vmatprep.subr.mxu0 0.0
        %265 = vmatpush1.msra.mxu0 0.0
        %266 = vmatprep.subr.mxu0 0.0
        %267 = vmatpush1.msra.mxu0 0.0
        %268 = vmatprep.subr.mxu0 0.0
        %269 = vmatpush1.msra.mxu0 0.0
        %270 = vmatprep.subr.mxu0 0.0
        %271 = vmatpush1.msra.mxu0 0.0
        %272 = vmatprep.subr.mxu0 0.0
        %273 = vmatpush1.msra.mxu0 0.0
        %274 = vmatprep.subr.mxu0 0.0
        %275 = vmatpush1.msra.mxu0 0.0
        %276 = vmatprep.subr.mxu0 0.0
        %277 = vmatpush1.msra.mxu0 0.0
        %278 = vmatprep.subr.mxu0 0.0
        %279 = vmatpush1.msra.mxu0 0.0
        %280 = vmatprep.subr.mxu0 0.0
        %281 = vmatpush1.msra.mxu0 0.0
        %282 = vmatprep.subr.mxu0 0.0
        %283 = vmatpush1.msra.mxu0 0.0
        %284 = vmatprep.subr.mxu0 0.0
        %285 = vmatpush1.msra.mxu0 0.0
        %286 = vmatprep.subr.mxu0 0.0
        %287 = vmatpush1.msra.mxu0 0.0
        %288 = vmatprep.subr.mxu0 0.0
        %289 = vmatpush1.msra.mxu0 0.0
        %290 = vmatprep.subr.mxu0 0.0
        %291 = vmatpush1.msra.mxu0 0.0
        %292 = vmatprep.subr.mxu0 0.0
        %293 = vmatpush1.msra.mxu0 0.0
        %294 = vmatprep.subr.mxu0 0.0
        %295 = vmatpush1.msra.mxu0 0.0
        %296 = vmatprep.subr.mxu0 0.0
        %297 = vmatpush1.msra.mxu0 0.0
        %298 = vmatprep.subr.mxu0 0.0
        %299 = vmatpush1.msra.mxu0 0.0
        %300 = vmatprep.subr.mxu0 0.0
        %301 = vmatpush1.msra.mxu0 0.0
        %302 = vmatprep.subr.mxu0 0.0
        %303 = vmatpush1.msra.mxu0 0.0
        %304 = vmatprep.mubr.f32.mxu0 0.0
        %305 = vmatmul.mubr.f32.gmra.mrb[0].mxu0 %v238
        %v306 = vpop.f32.mrb[0].mxu0
        %v307 = vadd.f32 0.0, %v306
        %v308 = vpop.f32.mrb[0].mxu0
        %309 = vdwg.mxu0
        %v310 = vadd.f32 %v230, %v307
        %311 = vst [vmem:[#allocation2] sm:$0xff] %v310
        // Predicated region
        $region45: #{tpu_custom_call.1} parent=31 // pred_check
          %p312 = pneg %p225
        $region46: #{tpu_custom_call.1} parent=31 // pred_check_branch
          %314 = sbr.rel (%p312) target = $region48
        $region47: #{tpu_custom_call.1} parent=31 // pred_region
          %v315 = vld [vmem:[#allocation2] sm:$0xff]
          %v316 = vld [vmem:[%s2] sm:$0x1]
          %v318 = vlaneseq
          %v319 = vshrl.u32 %v318, 7
          %v320 = vsub.s32 0, %v319
          %v321 = vrot.slane %v316, %v320
          %v323 = vadd.f32 %v315, %v321
          %v324 = vlaneseq
          %v325 = vand.u32 %v324, 127
          %v326 = vmax.f32 %v323, 0.0
          %v327 = vand.u32 2147483647, %v323
          %v328 = vsub.f32 0.0, %v327
          %v329 = vmul.f32 %v328, 1.442695
          %v330 = vpow.pop %v329
          %v331 = vadd.f32 %v330, 1.0
          %v332 = vlog2.pop %v331
          %v333 = vmul.f32 %v332, 0.6931472
          %v334 = vmul.f32 -0.5, %v330
          %v335 = vadd.f32 %v334, 1.0
          %v336 = vmul.f32 %v335, %v330
          %v337 = vand.u32 2147483647, %v330
          %vm338 = vcmp.lt.f32.partialorder %v337, 0.0004427343
          %v339 = vsel %vm338, %v336, %v333
          %v340 = vadd.f32 %v326, %v339
          %vm341 = vcmp.ge.s32.totalorder %v325, 16
          %v342 = vsel %vm341, %v340, %v323
          %343 = vst [vmem:[%s223] sm:$0xff] %v342
        $region48: #{tpu_custom_call.1} parent=31 // pred_fallthru
          _
        %s344 = sand.u32 %s116, 1
        %s345 = scalar_lea.sflag [#allocation5], %s344
        %s346 = sand.u32 %s116, 1
        %s347 = smul.addr %s346, 8
        %s348 = scalar_lea.vmem [#allocation8], %s347
        // Predicated region
        $region49: #{tpu_custom_call.1} parent=31 // pred_check
          %p349 = pneg %p126
        $region50: #{tpu_custom_call.1} parent=31 // pred_check_branch
          %351 = sbr.rel (%p349) target = $region52
        $region51: #{tpu_custom_call.1} parent=31 // pred_region
          %s353 = ssub.s32 128, 128
          %354 = vsyncadd %s345, %s353
          %s355 = smul.addr %s25, 128
          %s356 = scalar_lea.hbm %s3, %s355
          %s358 = sshll.u32 %s348, 4
          %s359 = int_to_ptr.vmem [resolvable:$true] %s358
          %361 = dma.vmem_to_hbm [thread:$0]  %s359, 128, %s356, %s345
        $region52: #{tpu_custom_call.1} parent=31 // pred_fallthru
          _
      $region32: #{tpu_custom_call.1} parent=5 // pred_fallthru
        _
      %p362 = scmp.le.s32.totalorder 2, %s16
      // Predicated region
      $region53: #{tpu_custom_call.1} parent=5 // pred_check
        %p363 = pneg %p362
      $region54: #{tpu_custom_call.1} parent=5 // pred_check_branch
        %365 = sbr.rel (%p363) target = $region56
      $region55: #{tpu_custom_call.1} parent=5 // pred_region
        %s366 = ssub.s32 %s16, 2
        // Predicated region
        $region57: #{tpu_custom_call.1} parent=55 // pred_check
          %p367 = pneg %p132
        $region58: #{tpu_custom_call.1} parent=55 // pred_check_branch
          %369 = sbr.rel (%p367) target = $region60
        $region59: #{tpu_custom_call.1} parent=55 // pred_region
          %s370 = sand.u32 %s117, 1
          %s371 = scalar_lea.sflag [#allocation5], %s370
          %s372 = sand.u32 %s117, 1
          %s373 = smul.addr %s372, 8
          %s374 = scalar_lea.vmem [#allocation8], %s373
          %375 = dma.done %s371, 128
        $region60: #{tpu_custom_call.1} parent=55 // pred_fallthru
          _
      $region56: #{tpu_custom_call.1} parent=5 // pred_fallthru
        _
    $region6: #{tpu_custom_call.1} parent=1 // loop_footer
      %s20 = sadd.s32 1, %s16
    $region7: #{tpu_custom_call.1} parent=1 // loop_footer_branch
      %15 = sbr.rel target = $region3
    $region8: #{tpu_custom_call.1} parent=1 // loop_exit
      _
    %376 = vsyncpa [#allocation4], 1
    %s377 = scalar_lea.sflag [#allocation4], 1
    %378 = vsyncpa %s377, 1
    %379 = vsyncpa [#allocation7], 1
    %380 = vsyncpa [#allocation5], 1
    %s381 = scalar_lea.sflag [#allocation5], 1
    %382 = vsyncpa %s381, 1

// kernel: tpu_custom_call.1
$region0: #{tpu_custom_call.1}
  #allocation0 [shape = 'u32[]', space=smem, size = 0x4, offset = 0x4, fixed_abs, tag = 'smem constant byte address 0x4 - core index']
  #allocation1 [shape = 'u32[144,128]{1,0:T(1,128)}', space=vmem, size = 0x12000, scoped, tag = 'internal scratch']
  #allocation2 [shape = 'f32[8,128]{1,0:T(8,128)}', space=vmem, size = 0x1000, scoped, tag = 'scratch operand']
  %s0 = inlined_call_operand.hbm [shape: f32[16,32], index: 0, kind: input, shape index: {}]
  %s1 = inlined_call_operand.hbm [shape: f32[32,128], index: 1, kind: input, shape index: {}]
  %s2 = inlined_call_operand.vmem [shape: f32[1,128], index: 2, kind: input, shape index: {}]
  %s3 = inlined_call_operand.hbm [shape: f32[16,128], index: 3, kind: output, shape index: {}]
  %s4 = sld [smem:[#allocation0]]
  $region61: #{tpu_custom_call.1} parent=0
    _
  %s6 = ssub.s32 1, %s4
  %s7 = scalar_select 0, %s6, %s4
  $region1: #{tpu_custom_call.1} parent=0
    #allocation3 [shape = 'u8[8192]{0}', space=vmem, size = 0x2000, scoped, tag = 'input window, operand 0']
    #allocation4 [shape = 's32[2]{0}', space=sflag, size = 0x8, scoped, tag = 'scoped memory for tpu_custom_call.1']
    #allocation5 [shape = 's32[2]{0}', space=sflag, size = 0x8, scoped, tag = 'scoped memory for tpu_custom_call.1']
    #allocation6 [shape = 'u8[16384]{0}', space=vmem, size = 0x4000, scoped, tag = 'input window, operand 1, single buffered']
    #allocation7 [shape = 's32[1]{0}', space=sflag, size = 0x4, scoped, tag = 'scoped memory for tpu_custom_call.1']
    #allocation8 [shape = 'u8[8192]{0}', space=vmem, size = 0x2000, scoped, tag = 'output window, operand 0']
    %8 = vsyncpa [#allocation4], 0
    %s9 = scalar_lea.sflag [#allocation4], 1
    %10 = vsyncpa %s9, 0
    %11 = vsyncpa [#allocation7], 0
    %12 = vsyncpa [#allocation5], 0
    %s13 = scalar_lea.sflag [#allocation5], 1
    %14 = vsyncpa %s13, 0
    loop: start=0, step=1, limit=4
    $region2: #{tpu_custom_call.1} parent=1 // loop_pre_header
      _
    $region3: #{tpu_custom_call.1} parent=1 // loop_header
      %s16 = sphi 0, %s20
      %p17 = scmp.ge.s32.totalorder %s16, 4
      %s23 = sphi 0, %s35
      %s24 = sphi 0, %s31
      %s25 = sphi 0, %s23
      %s26 = sphi 0, %s24
      %s27 = sphi 0, %s25
      %s28 = sphi 0, %s26
      %s40 = sphi 0, %s42
      %s43 = sphi 0, %s40
      %s44 = sphi 0, %s43
      %s60 = sphi 0, %s44
      %s66 = sphi 0, %s68
      %s69 = sphi 0, %s66
      %s70 = sphi 0, %s69
      %s86 = sphi 0, %s70
      %s90 = sphi 0, %s90
      %s92 = sphi 0, %s90
      %s93 = sphi 0, %s92
      %s107 = sphi 0, %s93
      %s113 = sphi 0, %s115
      %s116 = sphi 0, %s113
      %s117 = sphi 0, %s116
      %s133 = sphi 0, %s117
    $region4: #{tpu_custom_call.1} parent=1 // loop_header_branch
      %19 = sbr.rel (%p17) target = $region8
    $region5: #{tpu_custom_call.1} parent=1 // loop_body
      %s21 = ssub.s32 %s16, 1
      %s22 = ssub.s32 %s16, 2
      %s29 = sadd.s32 1, %s24
      %p30 = scmp.ge.s32.totalorder %s29, 1
      %s31 = scalar_select %p30, 0, %s29
      %s32 = sadd.s32 1, %s23
      %s33 = scalar_select %p30, %s32, %s23
      %p34 = scmp.ge.s32.totalorder %s33, 2
      %s35 = scalar_select %p34, 0, %s33
      %s36 = ssub.s32 %s23, %s35
      %s37 = ssub.s32 %s24, %s31
      %s38 = sor.u32 %s36, %s37
      %p39 = scmp.eq.s32.totalorder %s38, 0
      %s41 = sadd.s32 %s40, 1
      %s42 = scalar_select %p39, %s40, %s41
      %p45 = pneg %p39
      %p46 = scmp.eq.s32.totalorder %s16, 1
      %p47 = por %p45, %p46
      %p48 = scmp.ne.s32.totalorder %s40, %s43
      %p49 = scmp.eq.s32.totalorder %s16, 0
      %p50 = por %p48, %p49
      %p51 = scmp.ne.s32.totalorder %s40, %s43
      %p52 = scmp.eq.s32.totalorder %s21, 1
      %p53 = por %p51, %p52
      %p54 = scmp.ne.s32.totalorder %s43, %s44
      %p55 = scmp.eq.s32.totalorder %s21, 0
      %p56 = por %p54, %p55
      %p57 = scmp.ne.s32.totalorder %s43, %s44
      %p58 = scmp.eq.s32.totalorder %s22, 1
      %p59 = por %p57, %p58
      %p61 = scmp.ne.s32.totalorder %s44, %s60
      %p62 = scmp.eq.s32.totalorder %s22, 0
      %p63 = por %p61, %p62
      %s64 = ssub.s32 %s24, %s31
      %p65 = scmp.eq.s32.totalorder %s64, 0
      %s67 = sadd.s32 %s66, 1
      %s68 = scalar_select %p65, %s66, %s67
      %p71 = pneg %p65
      %p72 = scmp.eq.s32.totalorder %s16, 1
      %p73 = por %p71, %p72
      %p74 = scmp.ne.s32.totalorder %s66, %s69
      %p75 = scmp.eq.s32.totalorder %s16, 0
      %p76 = por %p74, %p75
      %p77 = scmp.ne.s32.totalorder %s66, %s69
      %p78 = scmp.eq.s32.totalorder %s21, 1
      %p79 = por %p77, %p78
      %p80 = scmp.ne.s32.totalorder %s69, %s70
      %p81 = scmp.eq.s32.totalorder %s21, 0
      %p82 = por %p80, %p81
      %p83 = scmp.ne.s32.totalorder %s69, %s70
      %p84 = scmp.eq.s32.totalorder %s22, 1
      %p85 = por %p83, %p84
      %p87 = scmp.ne.s32.totalorder %s70, %s86
      %p88 = scmp.eq.s32.totalorder %s22, 0
      %p89 = por %p87, %p88
      %s91 = sadd.s32 %s90, 1
      %p94 = scmp.eq.s32.totalorder %s16, 1
      %p95 = scmp.ne.s32.totalorder %s90, %s92
      %p96 = scmp.eq.s32.totalorder %s16, 0
      %p97 = por %p95, %p96
      %p98 = scmp.ne.s32.totalorder %s90, %s92
      %p99 = scmp.eq.s32.totalorder %s21, 1
      %p100 = por %p98, %p99
      %p101 = scmp.ne.s32.totalorder %s92, %s93
      %p102 = scmp.eq.s32.totalorder %s21, 0
      %p103 = por %p101, %p102
      %p104 = scmp.ne.s32.totalorder %s92, %s93
      %p105 = scmp.eq.s32.totalorder %s22, 1
      %p106 = por %p104, %p105
      %p108 = scmp.ne.s32.totalorder %s93, %s107
      %p109 = scmp.eq.s32.totalorder %s22, 0
      %p110 = por %p108, %p109
      %s111 = ssub.s32 %s23, %s35
      %p112 = scmp.eq.s32.totalorder %s111, 0
      %s114 = sadd.s32 %s113, 1
      %s115 = scalar_select %p112, %s113, %s114
      %p118 = pneg %p112
      %p119 = scmp.eq.s32.totalorder %s16, 1
      %p120 = por %p118, %p119
      %p121 = scmp.ne.s32.totalorder %s113, %s116
      %p122 = scmp.eq.s32.totalorder %s16, 0
      %p123 = por %p121, %p122
      %p124 = scmp.ne.s32.totalorder %s113, %s116
      %p125 = scmp.eq.s32.totalorder %s21, 1
      %p126 = por %p124, %p125
      %p127 = scmp.ne.s32.totalorder %s116, %s117
      %p128 = scmp.eq.s32.totalorder %s21, 0
      %p129 = por %p127, %p128
      %p130 = scmp.ne.s32.totalorder %s116, %s117
      %p131 = scmp.eq.s32.totalorder %s22, 1
      %p132 = por %p130, %p131
      %p134 = scmp.ne.s32.totalorder %s117, %s133
      %p135 = scmp.eq.s32.totalorder %s22, 0
      %p136 = por %p134, %p135
      %p137 = scmp.le.s32.totalorder 1, %s16
      %p138 = scmp.lt.s32.totalorder %s16, 3
      %p139 = pnand %p137, %p138
      %p140 = pneg %p139
      // Predicated region
      $region9: #{tpu_custom_call.1} parent=5 // pred_check
        _
      $region10: #{tpu_custom_call.1} parent=5 // pred_check_branch
        %142 = sbr.rel (%p139) target = $region12
      $region11: #{tpu_custom_call.1} parent=5 // pred_region
        %s143 = ssub.s32 %s16, 1
        // Predicated region
        $region13: #{tpu_custom_call.1} parent=11 // pred_check
          %p144 = pneg %p82
        $region14: #{tpu_custom_call.1} parent=11 // pred_check_branch
          %146 = sbr.rel (%p144) target = $region16
        $region15: #{tpu_custom_call.1} parent=11 // pred_region
          %s147 = smul.u32 4, %s26
          %s149 = ssub.s32 512, 512
          %150 = vsyncadd [#allocation7], %s149
          %s151 = smul.addr %s147, 128
          %s152 = scalar_lea.hbm %s1, %s151
          %s153 = sshll.u32 [#allocation6], 4
          %s154 = int_to_ptr.vmem [resolvable:$true] %s153
          %159 = dma.hbm_to_vmem [thread:$0]  %s152, 512, %s154, [#allocation7], 128, 128, 8
        $region16: #{tpu_custom_call.1} parent=11 // pred_fallthru
          _
        // Predicated region
        $region17: #{tpu_custom_call.1} parent=11 // pred_check
          %p160 = pneg %p103
        $region18: #{tpu_custom_call.1} parent=11 // pred_check_branch
          %162 = sbr.rel (%p160) target = $region20
        $region19: #{tpu_custom_call.1} parent=11 // pred_region
          _
        $region20: #{tpu_custom_call.1} parent=11 // pred_fallthru
          _
      $region12: #{tpu_custom_call.1} parent=5 // pred_fallthru
        _
      %p163 = scmp.lt.s32.totalorder %s16, 2
      // Predicated region
      $region21: #{tpu_custom_call.1} parent=5 // pred_check
        %p164 = pneg %p163
      $region22: #{tpu_custom_call.1} parent=5 // pred_check_branch
        %166 = sbr.rel (%p164) target = $region24
      $region23: #{tpu_custom_call.1} parent=5 // pred_region
        // Predicated region
        $region25: #{tpu_custom_call.1} parent=23 // pred_check
          %p167 = pneg %p50
        $region26: #{tpu_custom_call.1} parent=23 // pred_check_branch
          %169 = sbr.rel (%p167) target = $region28
        $region27: #{tpu_custom_call.1} parent=23 // pred_region
          %s170 = sand.u32 %s40, 1
          %s171 = scalar_lea.sflag [#allocation4], %s170
          %s172 = sand.u32 %s40, 1
          %s173 = smul.addr %s172, 8
          %s174 = scalar_lea.vmem [#allocation3], %s173
          %s176 = ssub.s32 128, 128
          %177 = vsyncadd %s171, %s176
          %s178 = sadd.s32 %s24, %s23
          %s179 = smul.addr %s178, 128
          %s180 = scalar_lea.hbm %s0, %s179
          %s182 = sshll.u32 %s174, 4
          %s183 = int_to_ptr.vmem [resolvable:$true] %s182
          %185 = dma.hbm_to_vmem [thread:$0]  %s180, 128, %s183, %s171
        $region28: #{tpu_custom_call.1} parent=23 // pred_fallthru
          _
      $region24: #{tpu_custom_call.1} parent=5 // pred_fallthru
        _
      %p186 = scmp.le.s32.totalorder 1, %s16
      %p187 = scmp.lt.s32.totalorder %s16, 3
      %p188 = pnand %p186, %p187
      %p189 = pneg %p188
      // Predicated region
      $region29: #{tpu_custom_call.1} parent=5 // pred_check
        _
      $region30: #{tpu_custom_call.1} parent=5 // pred_check_branch
        %191 = sbr.rel (%p188) target = $region32
      $region31: #{tpu_custom_call.1} parent=5 // pred_region
        %s192 = ssub.s32 %s16, 1
        %s193 = sand.u32 %s43, 1
        %s194 = scalar_lea.sflag [#allocation4], %s193
        %s195 = sand.u32 %s43, 1
        %s196 = smul.addr %s195, 8
        %s197 = scalar_lea.vmem [#allocation3], %s196
        // Predicated region
        $region33: #{tpu_custom_call.1} parent=31 // pred_check
          %p198 = pneg %p56
        $region34: #{tpu_custom_call.1} parent=31 // pred_check_branch
          %200 = sbr.rel (%p198) target = $region36
        $region35: #{tpu_custom_call.1} parent=31 // pred_region
          %201 = dma.done %s194, 128
        $region36: #{tpu_custom_call.1} parent=31 // pred_fallthru
          _
        // Predicated region
        $region37: #{tpu_custom_call.1} parent=31 // pred_check
          %p202 = pneg %p82
        $region38: #{tpu_custom_call.1} parent=31 // pred_check_branch
          %204 = sbr.rel (%p202) target = $region40
        $region39: #{tpu_custom_call.1} parent=31 // pred_region
          %205 = dma.done [#allocation7], 512
        $region40: #{tpu_custom_call.1} parent=31 // pred_fallthru
          _
        %s206 = sand.u32 %s43, 1
        %s207 = scalar_lea.sflag [#allocation4], %s206
        %s208 = sand.u32 %s43, 1
        %s209 = smul.addr %s208, 8
        %s210 = scalar_lea.vmem [#allocation3], %s209
        %p211 = pneg %p56
        %p212 = pneg %p53
        %p213 = pneg %p82
        %p214 = pneg %p79
        %p215 = pneg %p103
        %p216 = pneg %p100
        %p217 = pneg %p129
        %p218 = pneg %p126
        %s219 = sand.u32 %s116, 1
        %s220 = scalar_lea.sflag [#allocation5], %s219
        %s221 = sand.u32 %s116, 1
        %s222 = smul.addr %s221, 8
        %s223 = scalar_lea.vmem [#allocation8], %s222
        %s224 = smul.u32 4, %s26
        %p225 = scmp.eq.s32.totalorder %s26, 0
        // Predicated region
        $region41: #{tpu_custom_call.1} parent=31 // pred_check
          %p226 = pneg %p225
        $region42: #{tpu_custom_call.1} parent=31 // pred_check_branch
          %228 = sbr.rel (%p226) target = $region44
        $region43: #{tpu_custom_call.1} parent=31 // pred_region
          %229 = vst [vmem:[#allocation2] sm:$0xff] 0.0
        $region44: #{tpu_custom_call.1} parent=31 // pred_fallthru
          _
        %v230 = vld [vmem:[#allocation2] sm:$0xff]
        %v231 = vld [vmem:[%s197] sm:$0xff]
        %v232 = vld [vmem:[#allocation6] sm:$0xff]
        %v233 = vld [vmem:[#allocation6 + $0x8] sm:$0xff]
        %v234 = vld [vmem:[#allocation6 + $0x10] sm:$0xff]
        %v235 = vld [vmem:[#allocation6 + $0x18] sm:$0xff]
        %vm236 = vcmask 261120
        %v238 = vsel %vm236, %v231, 0
        %240 = vmatprep.subr.mxu0 0.0
        %241 = vmatpush1.msra.mxu0 %v232
        %242 = vmatprep.subr.mxu0 0.0
        %243 = vmatpush1.msra.mxu0 %v233
        %244 = vmatprep.subr.mxu0 0.0
        %245 = vmatpush1.msra.mxu0 %v234
        %246 = vmatprep.subr.mxu0 0.0
        %247 = vmatpush1.msra.mxu0 %v235
        %248 = vmatprep.subr.mxu0 0.0
        %249 = vmatpush1.msra.mxu0 0.0
        %250 = vmatprep.subr.mxu0 0.0
        %251 = vmatpush1.msra.mxu0 0.0
        %252 = vmatprep.subr.mxu0 0.0
        %253 = vmatpush1.msra.mxu0 0.0
        %254 = vmatprep.subr.mxu0 0.0
        %255 = vmatpush1.msra.mxu0 0.0
        %256 = vmatprep.subr.mxu0 0.0
        %257 = vmatpush1.msra.mxu0 0.0
        %258 = vmatprep.subr.mxu0 0.0
        %259 = vmatpush1.msra.mxu0 0.0
        %260 = vmatprep.subr.mxu0 0.0
        %261 = vmatpush1.msra.mxu0 0.0
        %262 = vmatprep.subr.mxu0 0.0
        %263 = vmatpush1.msra.mxu0 0.0
        %264 = vmatprep.subr.mxu0 0.0
        %265 = vmatpush1.msra.mxu0 0.0
        %266 = vmatprep.subr.mxu0 0.0
        %267 = vmatpush1.msra.mxu0 0.0
        %268 = vmatprep.subr.mxu0 0.0
        %269 = vmatpush1.msra.mxu0 0.0
        %270 = vmatprep.subr.mxu0 0.0
        %271 = vmatpush1.msra.mxu0 0.0
        %272 = vmatprep.subr.mxu0 0.0
        %273 = vmatpush1.msra.mxu0 0.0
        %274 = vmatprep.subr.mxu0 0.0
        %275 = vmatpush1.msra.mxu0 0.0
        %276 = vmatprep.subr.mxu0 0.0
        %277 = vmatpush1.msra.mxu0 0.0
        %278 = vmatprep.subr.mxu0 0.0
        %279 = vmatpush1.msra.mxu0 0.0
        %280 = vmatprep.subr.mxu0 0.0
        %281 = vmatpush1.msra.mxu0 0.0
        %282 = vmatprep.subr.mxu0 0.0
        %283 = vmatpush1.msra.mxu0 0.0
        %284 = vmatprep.subr.mxu0 0.0
        %285 = vmatpush1.msra.mxu0 0.0
        %286 = vmatprep.subr.mxu0 0.0
        %287 = vmatpush1.msra.mxu0 0.0
        %288 = vmatprep.subr.mxu0 0.0
        %289 = vmatpush1.msra.mxu0 0.0
        %290 = vmatprep.subr.mxu0 0.0
        %291 = vmatpush1.msra.mxu0 0.0
        %292 = vmatprep.subr.mxu0 0.0
        %293 = vmatpush1.msra.mxu0 0.0
        %294 = vmatprep.subr.mxu0 0.0
        %295 = vmatpush1.msra.mxu0 0.0
        %296 = vmatprep.subr.mxu0 0.0
        %297 = vmatpush1.msra.mxu0 0.0
        %298 = vmatprep.subr.mxu0 0.0
        %299 = vmatpush1.msra.mxu0 0.0
        %300 = vmatprep.subr.mxu0 0.0
        %301 = vmatpush1.msra.mxu0 0.0
        %302 = vmatprep.subr.mxu0 0.0
        %303 = vmatpush1.msra.mxu0 0.0
        %304 = vmatprep.mubr.f32.mxu0 0.0
        %305 = vmatmul.mubr.f32.gmra.mrb[0].mxu0 %v238
        %v306 = vpop.f32.mrb[0].mxu0
        %v307 = vadd.f32 0.0, %v306
        %v308 = vpop.f32.mrb[0].mxu0
        %309 = vdwg.mxu0
        %v310 = vadd.f32 %v230, %v307
        %311 = vst [vmem:[#allocation2] sm:$0xff] %v310
        // Predicated region
        $region45: #{tpu_custom_call.1} parent=31 // pred_check
          %p312 = pneg %p225
        $region46: #{tpu_custom_call.1} parent=31 // pred_check_branch
          %314 = sbr.rel (%p312) target = $region48
        $region47: #{tpu_custom_call.1} parent=31 // pred_region
          %v315 = vld [vmem:[#allocation2] sm:$0xff]
          %v316 = vld [vmem:[%s2] sm:$0x1]
          %v318 = vlaneseq
          %v319 = vshrl.u32 %v318, 7
          %v320 = vsub.s32 0, %v319
          %v321 = vrot.slane %v316, %v320
          %v323 = vadd.f32 %v315, %v321
          %v324 = vlaneseq
          %v325 = vand.u32 %v324, 127
          %v326 = vmax.f32 %v323, 0.0
          %v327 = vand.u32 2147483647, %v323
          %v328 = vsub.f32 0.0, %v327
          %v329 = vmul.f32 %v328, 1.442695
          %v330 = vpow.pop %v329
          %v331 = vadd.f32 %v330, 1.0
          %v332 = vlog2.pop %v331
          %v333 = vmul.f32 %v332, 0.6931472
          %v334 = vmul.f32 -0.5, %v330
          %v335 = vadd.f32 %v334, 1.0
          %v336 = vmul.f32 %v335, %v330
          %v337 = vand.u32 2147483647, %v330
          %vm338 = vcmp.lt.f32.partialorder %v337, 0.0004427343
          %v339 = vsel %vm338, %v336, %v333
          %v340 = vadd.f32 %v326, %v339
          %vm341 = vcmp.ge.s32.totalorder %v325, 16
          %v342 = vsel %vm341, %v340, %v323
          %343 = vst [vmem:[%s223] sm:$0xff] %v342
        $region48: #{tpu_custom_call.1} parent=31 // pred_fallthru
          _
        %s344 = sand.u32 %s116, 1
        %s345 = scalar_lea.sflag [#allocation5], %s344
        %s346 = sand.u32 %s116, 1
        %s347 = smul.addr %s346, 8
        %s348 = scalar_lea.vmem [#allocation8], %s347
        // Predicated region
        $region49: #{tpu_custom_call.1} parent=31 // pred_check
          %p349 = pneg %p126
        $region50: #{tpu_custom_call.1} parent=31 // pred_check_branch
          %351 = sbr.rel (%p349) target = $region52
        $region51: #{tpu_custom_call.1} parent=31 // pred_region
          %s353 = ssub.s32 128, 128
          %354 = vsyncadd %s345, %s353
          %s355 = smul.addr %s25, 128
          %s356 = scalar_lea.hbm %s3, %s355
          %s358 = sshll.u32 %s348, 4
          %s359 = int_to_ptr.vmem [resolvable:$true] %s358
          %361 = dma.vmem_to_hbm [thread:$0]  %s359, 128, %s356, %s345
        $region52: #{tpu_custom_call.1} parent=31 // pred_fallthru
          _
      $region32: #{tpu_custom_call.1} parent=5 // pred_fallthru
        _
      %p362 = scmp.le.s32.totalorder 2, %s16
      // Predicated region
      $region53: #{tpu_custom_call.1} parent=5 // pred_check
        %p363 = pneg %p362
      $region54: #{tpu_custom_call.1} parent=5 // pred_check_branch
        %365 = sbr.rel (%p363) target = $region56
      $region55: #{tpu_custom_call.1} parent=5 // pred_region
        %s366 = ssub.s32 %s16, 2
        // Predicated region
        $region57: #{tpu_custom_call.1} parent=55 // pred_check
          %p367 = pneg %p132
        $region58: #{tpu_custom_call.1} parent=55 // pred_check_branch
          %369 = sbr.rel (%p367) target = $region60
        $region59: #{tpu_custom_call.1} parent=55 // pred_region
          %s370 = sand.u32 %s117, 1
          %s371 = scalar_lea.sflag [#allocation5], %s370
          %s372 = sand.u32 %s117, 1
          %s373 = smul.addr %s372, 8
          %s374 = scalar_lea.vmem [#allocation8], %s373
          %375 = dma.done %s371, 128
        $region60: #{tpu_custom_call.1} parent=55 // pred_fallthru
          _
      $region56: #{tpu_custom_call.1} parent=5 // pred_fallthru
        _
    $region6: #{tpu_custom_call.1} parent=1 // loop_footer
      %s20 = sadd.s32 1, %s16
    $region7: #{tpu_custom_call.1} parent=1 // loop_footer_branch
      %15 = sbr.rel target = $region3
    $region8: #{tpu_custom_call.1} parent=1 // loop_exit
      _
    %376 = vsyncpa [#allocation4], 1
    %s377 = scalar_lea.sflag [#allocation4], 1
    %378 = vsyncpa %s377, 1
    %379 = vsyncpa [#allocation7], 1
    %380 = vsyncpa [#allocation5], 1
    %s381 = scalar_lea.sflag [#allocation5], 1
    %382 = vsyncpa %s381, 1

</llo_original>
